<compile_context>
chip_gen: v6e
topology: v6e:2x2x1
jax: 0.10.0
libtpu: 0.0.40
codegen_flags: <defaults>
</compile_context>

<pallas_src>
import jax
import jax.numpy as jnp
from jax.experimental import pallas as pl
from jax.experimental.pallas import tpu as pltpu


def _round_up(x, m):
    return ((x + m - 1) // m) * m


def _pick_tile(n_p, cap, min_tiles):
    """Largest multiple-of-128 divisor of n_p that is <= cap, leaving >= min_tiles blocks."""
    best = 128
    t = 128
    while t <= min(cap, n_p):
        if n_p % t == 0 and n_p // t >= min_tiles:
            best = t
        t += 128
    return best


def _make_gcn_kernel(tk, x_resident):
    """Kernel for one (tm x C_out_p) output row tile of diag(d) (A01 @ X_s) @ W + b.

    grid = (row tiles of A, contraction tiles over N); contraction axis last.
    acc_ref carries the running f32 partial sum of A01 @ X_s for this row tile;
    the (tiny) W matmul + d-scaling + bias run once in the k == last epilogue.
    """

    def kernel(a_ref, x_ref, w_ref, b_ref, d_ref, o_ref, acc_ref):
        k = pl.program_id(1)

        @pl.when(k == 0)
        def _init():
            acc_ref[...] = jnp.zeros_like(acc_ref)

        # 0/1 adjacency stored as int8 (HBM-bandwidth-bound operand); cast to
        # bf16 in VMEM (via f32 for portable lowering; VPU slots have slack),
        # f32 accumulation on the MXU.
        a_bf = a_ref[...].astype(jnp.float32).astype(jnp.bfloat16)
        if x_resident:
            # X is fully VMEM-resident: slice the contraction block in-kernel.
            x_blk = x_ref[pl.ds(pl.multiple_of(k * tk, 128), tk), :]
        else:
            x_blk = x_ref[...]
        acc_ref[...] += jnp.dot(a_bf, x_blk, preferred_element_type=jnp.float32)

        @pl.when(k == pl.num_programs(1) - 1)
        def _epilogue():
            # bf16 x bf16 single-pass MXU matmul, f32 accumulation; then the
            # second D^-1/2 factor (folded out of A) and the bias, in f32.
            xw = jnp.dot(acc_ref[...].astype(jnp.bfloat16), w_ref[...],
                         preferred_element_type=jnp.float32)
            o_ref[...] = (xw * d_ref[...] + b_ref[...]).astype(o_ref.dtype)

    return kernel


def gcn_conv_pallas(x, edge_index, w, b):
    """X' = D^-1/2 (A + I) D^-1/2 X W + b  for a dense 0/1 adjacency.

    x: [N, C_in] f32, edge_index: int32 [2, E] (src, dst), w: [C_in, C_out] f32,
    b: [C_out] f32.  Returns [N, C_out] f32.
    """
    n = x.shape[0]
    c_in, c_out = w.shape

    # Lane-dense padding for features; N padded only to 128 (A bytes ~ n_p^2).
    c_in_p = _round_up(c_in, 128)
    c_out_p = _round_up(c_out, 128)
    n_p = _round_up(n, 128)

    # Row tiles: keep >= 2 so both v7x TensorCores get work on the "parallel"
    # axis.  Contraction tiles: large A slabs amortize per-grid-step overhead.
    tm = _pick_tile(n_p, cap=512, min_tiles=2 if n_p >= 256 else 1)
    tk = _pick_tile(n_p, cap=1024, min_tiles=1)

    # --- padded, kernel-ready operands built directly (no f32 A_norm temp) ---
    # TODO(synk): dense O(N^2) adjacency build + dense A kernel; a real
    # large-sparse-graph path would scalar-prefetch a per-(i,k) nonzero-block
    # list and remap the contraction axis through it so empty A tiles are
    # never DMA'd.
    src, dst = edge_index[0], edge_index[1]
    adj = jnp.zeros((n_p, n_p), jnp.int8)
    adj = adj.at[dst, src].set(jnp.int8(1))            # message flows src -> dst
    diag = jnp.arange(n)
    adj = adj.at[diag, diag].set(jnp.int8(1))          # self loops (idempotent;
    #                                                    duplicates collapse to 1)

    deg = jnp.sum(adj.astype(jnp.float32), axis=1)[:n]
    d_inv_sqrt = jnp.where(deg > 0, jax.lax.rsqrt(deg), 0.0)          # [n] f32
    d_p = jnp.zeros((n_p, 1), jnp.float32).at[:n, 0].set(d_inv_sqrt)

    # First D^-1/2 factor folded into X (rows pre-scaled); exact 0/1 A above.
    x_scaled = x * d_inv_sqrt[:, None]
    x_p = jnp.zeros((n_p, c_in_p), jnp.bfloat16).at[:n, :c_in].set(
        x_scaled.astype(jnp.bfloat16))
    w_p = jnp.zeros((c_in_p, c_out_p), jnp.bfloat16).at[:c_in, :c_out].set(
        w.astype(jnp.bfloat16))
    b_p = jnp.zeros((1, c_out_p), jnp.float32).at[0, :c_out].set(b)

    x_bytes = n_p * c_in_p * 2
    x_resident = x_bytes <= 4 * 1024 * 1024   # keep X VMEM-resident when it fits

    grid = (n_p // tm, n_p // tk)

    if x_resident:
        x_spec = pl.BlockSpec((n_p, c_in_p), lambda i, k: (0, 0))
    else:
        x_spec = pl.BlockSpec((tk, c_in_p), lambda i, k: (k, 0))

    flops = 2 * n_p * n_p * c_in_p + 2 * n_p * c_in_p * c_out_p
    bytes_accessed = (n_p * n_p * 1                              # A (int8), once
                      + x_bytes * (1 if x_resident else grid[0])
                      + w_p.size * 2 + b_p.size * 4 + d_p.size * 4
                      + n_p * c_out_p * 4)                       # output

    # VMEM footprint (double-buffered operands + f32 accumulator + cast temps);
    # leave headroom vs v7x's 64 MiB physical VMEM.
    x_buf_bytes = x_bytes if x_resident else tk * c_in_p * 2
    vmem_bytes = (2 * tm * tk                     # A int8, double buffered
                  + 6 * tm * tk                   # in-kernel f32+bf16 cast temps
                  + 2 * x_buf_bytes
                  + 2 * w_p.size * 2 + 2 * b_p.size * 4 + 2 * tm * 4
                  + 2 * tm * c_out_p * 4          # output tile
                  + tm * c_in_p * 4)              # accumulator scratch
    vmem_limit = int(min(40 * 1024 * 1024, max(16 * 1024 * 1024, 2 * vmem_bytes)))

    out_p = pl.pallas_call(
        _make_gcn_kernel(tk, x_resident),
        out_shape=jax.ShapeDtypeStruct((n_p, c_out_p), jnp.float32),
        grid_spec=pltpu.PrefetchScalarGridSpec(
            num_scalar_prefetch=0,
            grid=grid,
            in_specs=[
                pl.BlockSpec((tm, tk), lambda i, k: (i, k)),            # A tile
                x_spec,                                                 # X
                pl.BlockSpec((c_in_p, c_out_p), lambda i, k: (0, 0)),   # W resident
                pl.BlockSpec((1, c_out_p), lambda i, k: (0, 0)),        # b resident
                pl.BlockSpec((tm, 1), lambda i, k: (i, 0)),             # d^-1/2 rows
            ],
            out_specs=pl.BlockSpec((tm, c_out_p), lambda i, k: (i, 0)),
            scratch_shapes=[pltpu.VMEM((tm, c_in_p), jnp.float32)],
        ),
        compiler_params=pltpu.CompilerParams(
            dimension_semantics=("parallel", "arbitrary"),
            vmem_limit_bytes=vmem_limit,
        ),
        cost_estimate=pl.CostEstimate(
            flops=int(flops), transcendentals=0,
            bytes_accessed=int(bytes_accessed)),
    )(adj, x_p, w_p, b_p, d_p)

    return out_p[:n, :c_out]


class SimpleConvWrapperPallas:
    """Mirrors SimpleConvWrapper.forward: data['x'] = conv(data['x'], data['edge_index'])."""

    def __init__(self, in_channels, out_channels, key):
        self.in_channels = in_channels
        self.out_channels = out_channels
        k_w, _ = jax.random.split(key)
        limit = (6.0 / (in_channels + out_channels)) ** 0.5
        self.weight = jax.random.uniform(
            k_w, (in_channels, out_channels), jnp.float32, -limit, limit
        )
        self.bias = jnp.zeros((out_channels,), jnp.float32)

    def __call__(self, data):
        x = data["x"]
        edge_index = data["edge_index"]
        data = dict(data)
        data["x"] = gcn_conv_pallas(x, edge_index, self.weight, self.bias)
        return data


if __name__ == "__main__":
    key = jax.random.PRNGKey(0)
    k_x, k_e, k_p = jax.random.split(key, 3)

    num_nodes = 64
    in_channels = 32
    out_channels = 64
    num_edges = 256

    x = jax.random.normal(k_x, (num_nodes, in_channels), jnp.float32)
    edge_index = jax.random.randint(k_e, (2, num_edges), 0, num_nodes, jnp.int32)
    data = {"x": x, "edge_index": edge_index}

    module = SimpleConvWrapperPallas(in_channels, out_channels, k_p)
    out = module(data)
    jax.block_until_ready(out["x"])

    # Plain-JAX reference mirroring the kernel's numerics (exact 0/1 adjacency,
    # D^-1/2 folded into X / output, bf16 rounding at the two MXU inputs).
    src, dst = edge_index[0], edge_index[1]
    adj = jnp.zeros((num_nodes, num_nodes), jnp.float32)
    adj = adj.at[dst, src].set(1.0)
    diag = jnp.arange(num_nodes)
    adj = adj.at[diag, diag].set(1.0)
    deg = adj.sum(axis=1)
    dinv = jnp.where(deg > 0, 1.0 / jnp.sqrt(deg), 0.0)
    x_s = (x * dinv[:, None]).astype(jnp.bfloat16).astype(jnp.float32)
    ax = adj @ x_s
    ref = (ax.astype(jnp.bfloat16).astype(jnp.float32)
           @ module.weight.astype(jnp.bfloat16).astype(jnp.float32)) * dinv[:, None] \
        + module.bias[None, :]

    assert out["x"].shape == (num_nodes, out_channels)
    assert jnp.allclose(out["x"], ref, atol=1e-2, rtol=1e-2)

    print("KERNEL_OK")
</pallas_src>

<mosaic_0001>
module attributes {stable_mosaic.version = 11 : i64} {
  func.func @kernel(%arg0: i32, %arg1: i32, %arg2: memref<128x128xi8, #tpu.memory_space<vmem>>, %arg3: memref<128x128xbf16, #tpu.memory_space<vmem>>, %arg4: memref<128x128xbf16, #tpu.memory_space<vmem>>, %arg5: memref<1x128xf32, #tpu.memory_space<vmem>>, %arg6: memref<128x1xf32, #tpu.memory_space<vmem>>, %arg7: memref<128x128xf32, #tpu.memory_space<vmem>>, %arg8: memref<128x128xf32, #tpu.memory_space<vmem>>) attributes {dimension_semantics = [#tpu.dimension_semantics<parallel>, #tpu.dimension_semantics<arbitrary>], iteration_bounds = array<i64: 1, 1>, scalar_prefetch = 0 : i64, scratch_operands = 1 : i64, tpu.core_type = #tpu.core_type<tc>, window_params = [{transform_indices = @transform_0, window_bounds = array<i64: 128, 128>}, {pipeline_mode = #tpu.pipeline_mode<synchronous>, transform_indices = @transform_1, window_bounds = array<i64: 128, 128>}, {pipeline_mode = #tpu.pipeline_mode<synchronous>, transform_indices = @transform_2, window_bounds = array<i64: 128, 128>}, {pipeline_mode = #tpu.pipeline_mode<synchronous>, transform_indices = @transform_3, window_bounds = array<i64: 1, 128>}, {transform_indices = @transform_4, window_bounds = array<i64: 128, 1>}, {transform_indices = @transform_5, window_bounds = array<i64: 128, 128>}]} {
    %c0_i32 = arith.constant 0 : i32
    %0 = arith.cmpi eq, %arg1, %c0_i32 : i32
    %1 = arith.extui %0 : i1 to i32
    %c0_i32_0 = arith.constant 0 : i32
    %2 = arith.cmpi ne, %1, %c0_i32_0 : i32
    scf.if %2 {
      %cst_9 = arith.constant 0.000000e+00 : f32
      %17 = vector.broadcast %cst_9 : f32 to vector<128x128xf32>
      %c0_10 = arith.constant 0 : index
      %c0_11 = arith.constant 0 : index
      %18 = vector.load %arg8[%c0_10, %c0_11] : memref<128x128xf32, #tpu.memory_space<vmem>>, vector<128x128xf32>
      tpu.vector_store %arg8[%c0_10, %c0_11], %17 {strides = array<i32>} : memref<128x128xf32, #tpu.memory_space<vmem>>, vector<128x128xf32>,
    } else {
    }
    %c0 = arith.constant 0 : index
    %c0_1 = arith.constant 0 : index
    %3 = vector.load %arg2[%c0, %c0_1] : memref<128x128xi8, #tpu.memory_space<vmem>>, vector<128x128xi8>
    %4 = arith.sitofp %3 : vector<128x128xi8> to vector<128x128xf32>
    %5 = arith.truncf %4 : vector<128x128xf32> to vector<128x128xbf16>
    %c128_i32 = arith.constant 128 : i32
    %6 = arith.muli %arg1, %c128_i32 : i32
    %7 = tpu.assume_multiple %6, 128 : i32
    %8 = arith.index_cast %7 : i32 to index
    %c0_2 = arith.constant 0 : index
    %9 = vector.load %arg3[%8, %c0_2] : memref<128x128xbf16, #tpu.memory_space<vmem>>, vector<128x128xbf16>
    %c0_3 = arith.constant 0 : index
    %c0_4 = arith.constant 0 : index
    %10 = vector.load %arg8[%c0_3, %c0_4] : memref<128x128xf32, #tpu.memory_space<vmem>>, vector<128x128xf32>
    %cst = arith.constant dense<0.000000e+00> : vector<128x128xf32>
    %11 = tpu.matmul %5, %9, %cst {dimension_numbers = #tpu.dot_dimension_numbers<[1], [0], [0], [1], [0, 0, 1, 1], [], []>} : vector<128x128xbf16>, vector<128x128xbf16>, vector<128x128xf32> -> vector<128x128xf32>
    %12 = arith.addf %10, %11 : vector<128x128xf32>
    %c0_5 = arith.constant 0 : index
    %c0_6 = arith.constant 0 : index
    %13 = vector.load %arg8[%c0_5, %c0_6] : memref<128x128xf32, #tpu.memory_space<vmem>>, vector<128x128xf32>
    tpu.vector_store %arg8[%c0_5, %c0_6], %12 {strides = array<i32>} : memref<128x128xf32, #tpu.memory_space<vmem>>, vector<128x128xf32>,
    %c0_i32_7 = arith.constant 0 : i32
    %14 = arith.cmpi eq, %arg1, %c0_i32_7 : i32
    %15 = arith.extui %14 : i1 to i32
    %c0_i32_8 = arith.constant 0 : i32
    %16 = arith.cmpi ne, %15, %c0_i32_8 : i32
    scf.if %16 {
      %c0_9 = arith.constant 0 : index
      %c0_10 = arith.constant 0 : index
      %17 = vector.load %arg8[%c0_9, %c0_10] : memref<128x128xf32, #tpu.memory_space<vmem>>, vector<128x128xf32>
      %18 = arith.truncf %17 : vector<128x128xf32> to vector<128x128xbf16>
      %c0_11 = arith.constant 0 : index
      %c0_12 = arith.constant 0 : index
      %19 = vector.load %arg4[%c0_11, %c0_12] : memref<128x128xbf16, #tpu.memory_space<vmem>>, vector<128x128xbf16>
      %cst_13 = arith.constant dense<0.000000e+00> : vector<128x128xf32>
      %20 = tpu.matmul %18, %19, %cst_13 {dimension_numbers = #tpu.dot_dimension_numbers<[1], [0], [0], [1], [0, 0, 1, 1], [], []>} : vector<128x128xbf16>, vector<128x128xbf16>, vector<128x128xf32> -> vector<128x128xf32>
      %c0_14 = arith.constant 0 : index
      %c0_15 = arith.constant 0 : index
      %21 = vector.load %arg6[%c0_14, %c0_15] : memref<128x1xf32, #tpu.memory_space<vmem>>, vector<128x1xf32>
      %22 = vector.broadcast %21 : vector<128x1xf32> to vector<128x128xf32>
      %23 = arith.mulf %20, %22 : vector<128x128xf32>
      %c0_16 = arith.constant 0 : index
      %c0_17 = arith.constant 0 : index
      %24 = vector.load %arg5[%c0_16, %c0_17] : memref<1x128xf32, #tpu.memory_space<vmem>>, vector<1x128xf32>
      %25 = vector.broadcast %24 : vector<1x128xf32> to vector<128x128xf32>
      %26 = arith.addf %23, %25 : vector<128x128xf32>
      %c0_18 = arith.constant 0 : index
      %c0_19 = arith.constant 0 : index
      %27 = vector.load %arg7[%c0_18, %c0_19] : memref<128x128xf32, #tpu.memory_space<vmem>>, vector<128x128xf32>
      tpu.vector_store %arg7[%c0_18, %c0_19], %26 {strides = array<i32>} : memref<128x128xf32, #tpu.memory_space<vmem>>, vector<128x128xf32>,
    } else {
    }
    return
  }
  func.func @transform_0(%arg0: i32, %arg1: i32) -> (i32, i32) {
    %c0_i32 = arith.constant 0 : i32
    return %arg0, %arg1 : i32, i32
  }
  func.func @transform_1(%arg0: i32, %arg1: i32) -> (i32, i32) {
    %c0_i32 = arith.constant 0 : i32
    %c0_i32_0 = arith.constant 0 : i32
    %c0_i32_1 = arith.constant 0 : i32
    return %c0_i32, %c0_i32_0 : i32, i32
  }
  func.func @transform_2(%arg0: i32, %arg1: i32) -> (i32, i32) {
    %c0_i32 = arith.constant 0 : i32
    %c0_i32_0 = arith.constant 0 : i32
    %c0_i32_1 = arith.constant 0 : i32
    return %c0_i32, %c0_i32_0 : i32, i32
  }
  func.func @transform_3(%arg0: i32, %arg1: i32) -> (i32, i32) {
    %c0_i32 = arith.constant 0 : i32
    %c0_i32_0 = arith.constant 0 : i32
    %c0_i32_1 = arith.constant 0 : i32
    return %c0_i32, %c0_i32_0 : i32, i32
  }
  func.func @transform_4(%arg0: i32, %arg1: i32) -> (i32, i32) {
    %c0_i32 = arith.constant 0 : i32
    %c0_i32_0 = arith.constant 0 : i32
    return %arg0, %c0_i32 : i32, i32
  }
  func.func @transform_5(%arg0: i32, %arg1: i32) -> (i32, i32) {
    %c0_i32 = arith.constant 0 : i32
    %c0_i32_0 = arith.constant 0 : i32
    return %arg0, %c0_i32 : i32, i32
  }
}

</mosaic_0001>

<llo_original>
// kernel: tpu_custom_call.1
$region0: #{tpu_custom_call.1}
  #allocation0 [shape = 'u32[]', space=smem, size = 0x4, offset = 0x4, fixed_abs, tag = 'smem constant byte address 0x4 - core index']
  #allocation1 [shape = 'u32[144,128]{1,0:T(1,128)}', space=vmem, size = 0x12000, scoped, tag = 'internal scratch']
  #allocation2 [shape = 'f32[128,128]{1,0:T(8,128)}', space=vmem, size = 0x10000, scoped, tag = 'scratch operand']
  %s0 = inlined_call_operand.hbm [shape: s8[128,128], index: 0, kind: input, shape index: {}]
  %s1 = inlined_call_operand.vmem [shape: bf16[128,128], index: 1, kind: input, shape index: {}]
  %s2 = inlined_call_operand.vmem [shape: bf16[128,128], index: 2, kind: input, shape index: {}]
  %s3 = inlined_call_operand.vmem [shape: f32[1,128], index: 3, kind: input, shape index: {}]
  %s4 = inlined_call_operand.vmem [shape: f32[128,1], index: 4, kind: input, shape index: {}]
  %s5 = inlined_call_operand.hbm [shape: f32[128,128], index: 5, kind: output, shape index: {}]
  %s6 = sld [smem:[#allocation0]]
  $region42: #{tpu_custom_call.1} parent=0
    _
  %s8 = ssub.s32 1, %s6
  %s9 = scalar_select 0, %s8, %s6
  $region1: #{tpu_custom_call.1} parent=0
    #allocation3 [shape = 'u8[16384]{0}', space=vmem, size = 0x4000, scoped, tag = 'input window, operand 0, single buffered']
    #allocation4 [shape = 's32[1]{0}', space=sflag, size = 0x4, scoped, tag = 'scoped memory for tpu_custom_call.1']
    #allocation5 [shape = 's32[1]{0}', space=sflag, size = 0x4, scoped, tag = 'scoped memory for tpu_custom_call.1']
    #allocation6 [shape = 'u8[65536]{0}', space=vmem, size = 0x10000, scoped, tag = 'output window, operand 0, single buffered']
    %10 = vsyncpa [#allocation4], 0
    %11 = vsyncpa [#allocation5], 0
    // Predicated region
    $region2: #{tpu_custom_call.1} parent=1 // pred_check
      _
    $region3: #{tpu_custom_call.1} parent=1 // pred_check_branch
      %13 = sbr.rel (0) target = $region5
    $region4: #{tpu_custom_call.1} parent=1 // pred_region
      %s15 = ssub.s32 512, 512
      %16 = vsyncadd [#allocation4], %s15
      %s17 = sshll.u32 [#allocation3], 4
      %s18 = int_to_ptr.vmem [resolvable:$true] %s17
      %23 = dma.hbm_to_vmem [thread:$0]  %s0, 512, %s18, [#allocation4], 128, 128, 8
    $region5: #{tpu_custom_call.1} parent=1 // pred_fallthru
      _
    // Predicated region
    $region6: #{tpu_custom_call.1} parent=1 // pred_check
      _
    $region7: #{tpu_custom_call.1} parent=1 // pred_check_branch
      %25 = sbr.rel (0) target = $region9
    $region8: #{tpu_custom_call.1} parent=1 // pred_region
      _
    $region9: #{tpu_custom_call.1} parent=1 // pred_fallthru
      _
    // Predicated region
    $region10: #{tpu_custom_call.1} parent=1 // pred_check
      _
    $region11: #{tpu_custom_call.1} parent=1 // pred_check_branch
      %27 = sbr.rel (0) target = $region13
    $region12: #{tpu_custom_call.1} parent=1 // pred_region
      _
    $region13: #{tpu_custom_call.1} parent=1 // pred_fallthru
      _
    // Predicated region
    $region14: #{tpu_custom_call.1} parent=1 // pred_check
      _
    $region15: #{tpu_custom_call.1} parent=1 // pred_check_branch
      %29 = sbr.rel (0) target = $region17
    $region16: #{tpu_custom_call.1} parent=1 // pred_region
      _
    $region17: #{tpu_custom_call.1} parent=1 // pred_fallthru
      _
    // Predicated region
    $region18: #{tpu_custom_call.1} parent=1 // pred_check
      _
    $region19: #{tpu_custom_call.1} parent=1 // pred_check_branch
      %31 = sbr.rel (0) target = $region21
    $region20: #{tpu_custom_call.1} parent=1 // pred_region
      _
    $region21: #{tpu_custom_call.1} parent=1 // pred_fallthru
      _
    // Predicated region
    $region22: #{tpu_custom_call.1} parent=1 // pred_check
      _
    $region23: #{tpu_custom_call.1} parent=1 // pred_check_branch
      %33 = sbr.rel (0) target = $region25
    $region24: #{tpu_custom_call.1} parent=1 // pred_region
      %34 = dma.done [#allocation4], 512
    $region25: #{tpu_custom_call.1} parent=1 // pred_fallthru
      _
    %p36 = scmp.eq.s32.totalorder 0, 0
    // Predicated region
    $region26: #{tpu_custom_call.1} parent=1 // pred_check
      %p37 = pneg %p36
    $region27: #{tpu_custom_call.1} parent=1 // pred_check_branch
      %39 = sbr.rel (%p37) target = $region29
    $region28: #{tpu_custom_call.1} parent=1 // pred_region
      %40 = vst [vmem:[#allocation2] sm:$0xff] 0.0
      %41 = vst [vmem:[#allocation2 + $0x8] sm:$0xff] 0.0
      %42 = vst [vmem:[#allocation2 + $0x10] sm:$0xff] 0.0
      %43 = vst [vmem:[#allocation2 + $0x18] sm:$0xff] 0.0
      %44 = vst [vmem:[#allocation2 + $0x20] sm:$0xff] 0.0
      %45 = vst [vmem:[#allocation2 + $0x28] sm:$0xff] 0.0
      %46 = vst [vmem:[#allocation2 + $0x30] sm:$0xff] 0.0
      %47 = vst [vmem:[#allocation2 + $0x38] sm:$0xff] 0.0
      %48 = vst [vmem:[#allocation2 + $0x40] sm:$0xff] 0.0
      %49 = vst [vmem:[#allocation2 + $0x48] sm:$0xff] 0.0
      %50 = vst [vmem:[#allocation2 + $0x50] sm:$0xff] 0.0
      %51 = vst [vmem:[#allocation2 + $0x58] sm:$0xff] 0.0
      %52 = vst [vmem:[#allocation2 + $0x60] sm:$0xff] 0.0
      %53 = vst [vmem:[#allocation2 + $0x68] sm:$0xff] 0.0
      %54 = vst [vmem:[#allocation2 + $0x70] sm:$0xff] 0.0
      %55 = vst [vmem:[#allocation2 + $0x78] sm:$0xff] 0.0
    $region29: #{tpu_custom_call.1} parent=1 // pred_fallthru
      _
    %v56 = vld [vmem:[#allocation3] sm:$0xff]
    %v57 = vld [vmem:[#allocation3 + $0x8] sm:$0xff]
    %v58 = vld [vmem:[#allocation3 + $0x10] sm:$0xff]
    %v59 = vld [vmem:[#allocation3 + $0x18] sm:$0xff]
    %v60 = vunpack.c.l.s8.bf16 %v56
    %v61 = vunpack.c.h.s8.bf16 %v56
    %v62 = vunpack.c.l.s8.bf16 %v57
    %v63 = vunpack.c.h.s8.bf16 %v57
    %v64 = vunpack.c.l.s8.bf16 %v58
    %v65 = vunpack.c.h.s8.bf16 %v58
    %v66 = vunpack.c.l.s8.bf16 %v59
    %v67 = vunpack.c.h.s8.bf16 %v59
    %s68 = smul.u32 0, 128
    %s69 = sshra.s32 %s68, 3
    %s70 = sand.u32 %s68, 7
    %s71 = smul.addr %s69, 4
    %s72 = scalar_lea.vmem %s1, %s71
    %v73 = vld [vmem:[%s72] sm:$0xf]
    %v74 = vld [vmem:[%s72 + $0x4] sm:$0xf]
    %v75 = vld [vmem:[%s72 + $0x8] sm:$0xf]
    %v76 = vld [vmem:[%s72 + $0xc] sm:$0xf]
    %v77 = vld [vmem:[%s72 + $0x10] sm:$0xf]
    %v78 = vld [vmem:[%s72 + $0x14] sm:$0xf]
    %v79 = vld [vmem:[%s72 + $0x18] sm:$0xf]
    %v80 = vld [vmem:[%s72 + $0x1c] sm:$0xf]
    %v81 = vld [vmem:[%s72 + $0x20] sm:$0xf]
    %v82 = vld [vmem:[%s72 + $0x24] sm:$0xf]
    %v83 = vld [vmem:[%s72 + $0x28] sm:$0xf]
    %v84 = vld [vmem:[%s72 + $0x2c] sm:$0xf]
    %v85 = vld [vmem:[%s72 + $0x30] sm:$0xf]
    %v86 = vld [vmem:[%s72 + $0x34] sm:$0xf]
    %v87 = vld [vmem:[%s72 + $0x38] sm:$0xf]
    %v88 = vld [vmem:[%s72 + $0x3c] sm:$0xf]
    %v89 = vld [vmem:[#allocation2] sm:$0xff]
    %v90 = vld [vmem:[#allocation2 + $0x8] sm:$0xff]
    %v91 = vld [vmem:[#allocation2 + $0x10] sm:$0xff]
    %v92 = vld [vmem:[#allocation2 + $0x18] sm:$0xff]
    %v93 = vld [vmem:[#allocation2 + $0x20] sm:$0xff]
    %v94 = vld [vmem:[#allocation2 + $0x28] sm:$0xff]
    %v95 = vld [vmem:[#allocation2 + $0x30] sm:$0xff]
    %v96 = vld [vmem:[#allocation2 + $0x38] sm:$0xff]
    %v97 = vld [vmem:[#allocation2 + $0x40] sm:$0xff]
    %v98 = vld [vmem:[#allocation2 + $0x48] sm:$0xff]
    %v99 = vld [vmem:[#allocation2 + $0x50] sm:$0xff]
    %v100 = vld [vmem:[#allocation2 + $0x58] sm:$0xff]
    %v101 = vld [vmem:[#allocation2 + $0x60] sm:$0xff]
    %v102 = vld [vmem:[#allocation2 + $0x68] sm:$0xff]
    %v103 = vld [vmem:[#allocation2 + $0x70] sm:$0xff]
    %v104 = vld [vmem:[#allocation2 + $0x78] sm:$0xff]
    %v121 = vunpack.c.l.b16 %v73
    %v122 = vunpack.c.l.b16 %v74
    %v123 = vunpack.c.l.b16 %v75
    %v124 = vunpack.c.l.b16 %v76
    %v125 = vunpack.c.l.b16 %v77
    %v126 = vunpack.c.l.b16 %v78
    %v127 = vunpack.c.l.b16 %v79
    %v128 = vunpack.c.l.b16 %v80
    %v129 = vunpack.c.l.b16 %v81
    %v130 = vunpack.c.l.b16 %v82
    %v131 = vunpack.c.l.b16 %v83
    %v132 = vunpack.c.l.b16 %v84
    %v133 = vunpack.c.l.b16 %v85
    %v134 = vunpack.c.l.b16 %v86
    %v135 = vunpack.c.l.b16 %v87
    %v136 = vunpack.c.l.b16 %v88
    %v137 = vpack.c.b16 %v122, %v121
    %v138 = vpack.c.b16 %v124, %v123
    %v139 = vpack.c.b16 %v126, %v125
    %v140 = vpack.c.b16 %v128, %v127
    %v141 = vpack.c.b16 %v130, %v129
    %v142 = vpack.c.b16 %v132, %v131
    %v143 = vpack.c.b16 %v134, %v133
    %v144 = vpack.c.b16 %v136, %v135
    %153 = vmatprep.subr.bf16.mxu0 0
    %154 = vmatpush1.bf16.msra.mxu0 %v144
    %155 = vmatprep.subr.bf16.mxu0 0
    %156 = vmatpush1.bf16.msra.mxu0 %v143
    %157 = vmatprep.subr.bf16.mxu0 0
    %158 = vmatpush1.bf16.msra.mxu0 %v142
    %159 = vmatprep.subr.bf16.mxu0 0
    %160 = vmatpush1.bf16.msra.mxu0 %v141
    %161 = vmatprep.subr.bf16.mxu0 0
    %162 = vmatpush1.bf16.msra.mxu0 %v140
    %163 = vmatprep.subr.bf16.mxu0 0
    %164 = vmatpush1.bf16.msra.mxu0 %v139
    %165 = vmatprep.subr.bf16.mxu0 0
    %166 = vmatpush1.bf16.msra.mxu0 %v138
    %167 = vmatprep.subr.bf16.mxu0 0
    %168 = vmatpush1.bf16.msra.mxu0 %v137
    %169 = vmatprep.subr.bf16.mxu0 0
    %170 = vmatpush2.bf16.msra.mxu0 0
    %171 = vmatprep.subr.bf16.mxu0 0
    %172 = vmatpush2.bf16.msra.mxu0 0
    %173 = vmatprep.subr.bf16.mxu0 0
    %174 = vmatpush2.bf16.msra.mxu0 0
    %175 = vmatprep.subr.bf16.mxu0 0
    %176 = vmatpush2.bf16.msra.mxu0 0
    %177 = vmatprep.subr.bf16.mxu0 0
    %178 = vmatpush2.bf16.msra.mxu0 0
    %179 = vmatprep.subr.bf16.mxu0 0
    %180 = vmatpush2.bf16.msra.mxu0 0
    %181 = vmatprep.subr.bf16.mxu0 0
    %182 = vmatpush2.bf16.msra.mxu0 0
    %183 = vmatprep.subr.bf16.mxu0 0
    %184 = vmatpush2.bf16.msra.mxu0 0
    %185 = vmatprep.mubr.bf16.mxu0 0
    %186 = vmatmul.mubr.bf16.gmra.mxu0 %v60
    %v187 = vpop.f32.mrf.mxu0
    %v188 = vadd.f32 0.0, %v187
    %v189 = vpop.f32.mrf.mxu0
    %v190 = vpop.f32.mrf.mxu0
    %v191 = vadd.f32 0.0, %v190
    %v192 = vpop.f32.mrf.mxu0
    %193 = vmatprep.mubr.bf16.mxu0 0
    %194 = vmatmul.mubr.bf16.gmra.mxu0 %v61
    %v195 = vpop.f32.mrf.mxu0
    %v196 = vadd.f32 0.0, %v195
    %v197 = vpop.f32.mrf.mxu0
    %v198 = vpop.f32.mrf.mxu0
    %v199 = vadd.f32 0.0, %v198
    %v200 = vpop.f32.mrf.mxu0
    %201 = vmatprep.mubr.bf16.mxu0 0
    %202 = vmatmul.mubr.bf16.gmra.mxu0 %v62
    %v203 = vpop.f32.mrf.mxu0
    %v204 = vadd.f32 0.0, %v203
    %v205 = vpop.f32.mrf.mxu0
    %v206 = vpop.f32.mrf.mxu0
    %v207 = vadd.f32 0.0, %v206
    %v208 = vpop.f32.mrf.mxu0
    %209 = vmatprep.mubr.bf16.mxu0 0
    %210 = vmatmul.mubr.bf16.gmra.mxu0 %v63
    %v211 = vpop.f32.mrf.mxu0
    %v212 = vadd.f32 0.0, %v211
    %v213 = vpop.f32.mrf.mxu0
    %v214 = vpop.f32.mrf.mxu0
    %v215 = vadd.f32 0.0, %v214
    %v216 = vpop.f32.mrf.mxu0
    %217 = vmatprep.mubr.bf16.mxu0 0
    %218 = vmatmul.mubr.bf16.gmra.mxu0 %v64
    %v219 = vpop.f32.mrf.mxu0
    %v220 = vadd.f32 0.0, %v219
    %v221 = vpop.f32.mrf.mxu0
    %v222 = vpop.f32.mrf.mxu0
    %v223 = vadd.f32 0.0, %v222
    %v224 = vpop.f32.mrf.mxu0
    %225 = vmatprep.mubr.bf16.mxu0 0
    %226 = vmatmul.mubr.bf16.gmra.mxu0 %v65
    %v227 = vpop.f32.mrf.mxu0
    %v228 = vadd.f32 0.0, %v227
    %v229 = vpop.f32.mrf.mxu0
    %v230 = vpop.f32.mrf.mxu0
    %v231 = vadd.f32 0.0, %v230
    %v232 = vpop.f32.mrf.mxu0
    %233 = vmatprep.mubr.bf16.mxu0 0
    %234 = vmatmul.mubr.bf16.gmra.mxu0 %v66
    %v235 = vpop.f32.mrf.mxu0
    %v236 = vadd.f32 0.0, %v235
    %v237 = vpop.f32.mrf.mxu0
    %v238 = vpop.f32.mrf.mxu0
    %v239 = vadd.f32 0.0, %v238
    %v240 = vpop.f32.mrf.mxu0
    %241 = vmatprep.mubr.bf16.mxu0 0
    %242 = vmatmul.mubr.bf16.gmra.mxu0 %v67
    %v243 = vpop.f32.mrf.mxu0
    %v244 = vadd.f32 0.0, %v243
    %v245 = vpop.f32.mrf.mxu0
    %v246 = vpop.f32.mrf.mxu0
    %v247 = vadd.f32 0.0, %v246
    %v248 = vpop.f32.mrf.mxu0
    %249 = vdwg.mxu0
    %v250 = vadd.f32 %v89, %v188
    %v251 = vadd.f32 %v90, %v191
    %v252 = vadd.f32 %v91, %v196
    %v253 = vadd.f32 %v92, %v199
    %v254 = vadd.f32 %v93, %v204
    %v255 = vadd.f32 %v94, %v207
    %v256 = vadd.f32 %v95, %v212
    %v257 = vadd.f32 %v96, %v215
    %v258 = vadd.f32 %v97, %v220
    %v259 = vadd.f32 %v98, %v223
    %v260 = vadd.f32 %v99, %v228
    %v261 = vadd.f32 %v100, %v231
    %v262 = vadd.f32 %v101, %v236
    %v263 = vadd.f32 %v102, %v239
    %v264 = vadd.f32 %v103, %v244
    %v265 = vadd.f32 %v104, %v247
    %266 = vst [vmem:[#allocation2] sm:$0xff] %v250
    %267 = vst [vmem:[#allocation2 + $0x8] sm:$0xff] %v251
    %268 = vst [vmem:[#allocation2 + $0x10] sm:$0xff] %v252
    %269 = vst [vmem:[#allocation2 + $0x18] sm:$0xff] %v253
    %270 = vst [vmem:[#allocation2 + $0x20] sm:$0xff] %v254
    %271 = vst [vmem:[#allocation2 + $0x28] sm:$0xff] %v255
    %272 = vst [vmem:[#allocation2 + $0x30] sm:$0xff] %v256
    %273 = vst [vmem:[#allocation2 + $0x38] sm:$0xff] %v257
    %274 = vst [vmem:[#allocation2 + $0x40] sm:$0xff] %v258
    %275 = vst [vmem:[#allocation2 + $0x48] sm:$0xff] %v259
    %276 = vst [vmem:[#allocation2 + $0x50] sm:$0xff] %v260
    %277 = vst [vmem:[#allocation2 + $0x58] sm:$0xff] %v261
    %278 = vst [vmem:[#allocation2 + $0x60] sm:$0xff] %v262
    %279 = vst [vmem:[#allocation2 + $0x68] sm:$0xff] %v263
    %280 = vst [vmem:[#allocation2 + $0x70] sm:$0xff] %v264
    %281 = vst [vmem:[#allocation2 + $0x78] sm:$0xff] %v265
    // Predicated region
    $region30: #{tpu_custom_call.1} parent=1 // pred_check
      %p282 = pneg %p36
    $region31: #{tpu_custom_call.1} parent=1 // pred_check_branch
      %284 = sbr.rel (%p282) target = $region33
    $region32: #{tpu_custom_call.1} parent=1 // pred_region
      %v285 = vld [vmem:[#allocation2] sm:$0xff]
      %v286 = vld [vmem:[#allocation2 + $0x8] sm:$0xff]
      %v287 = vld [vmem:[#allocation2 + $0x10] sm:$0xff]
      %v288 = vld [vmem:[#allocation2 + $0x18] sm:$0xff]
      %v289 = vld [vmem:[#allocation2 + $0x20] sm:$0xff]
      %v290 = vld [vmem:[#allocation2 + $0x28] sm:$0xff]
      %v291 = vld [vmem:[#allocation2 + $0x30] sm:$0xff]
      %v292 = vld [vmem:[#allocation2 + $0x38] sm:$0xff]
      %v293 = vld [vmem:[#allocation2 + $0x40] sm:$0xff]
      %v294 = vld [vmem:[#allocation2 + $0x48] sm:$0xff]
      %v295 = vld [vmem:[#allocation2 + $0x50] sm:$0xff]
      %v296 = vld [vmem:[#allocation2 + $0x58] sm:$0xff]
      %v297 = vld [vmem:[#allocation2 + $0x60] sm:$0xff]
      %v298 = vld [vmem:[#allocation2 + $0x68] sm:$0xff]
      %v299 = vld [vmem:[#allocation2 + $0x70] sm:$0xff]
      %v300 = vld [vmem:[#allocation2 + $0x78] sm:$0xff]
      %v301 = vpack.c.bf16 %v286, %v285
      %v302 = vpack.c.bf16 %v288, %v287
      %v303 = vpack.c.bf16 %v290, %v289
      %v304 = vpack.c.bf16 %v292, %v291
      %v305 = vpack.c.bf16 %v294, %v293
      %v306 = vpack.c.bf16 %v296, %v295
      %v307 = vpack.c.bf16 %v298, %v297
      %v308 = vpack.c.bf16 %v300, %v299
      %v309 = vld [vmem:[%s2] sm:$0xf]
      %v310 = vld [vmem:[%s2 + $0x4] sm:$0xf]
      %v311 = vld [vmem:[%s2 + $0x8] sm:$0xf]
      %v312 = vld [vmem:[%s2 + $0xc] sm:$0xf]
      %v313 = vld [vmem:[%s2 + $0x10] sm:$0xf]
      %v314 = vld [vmem:[%s2 + $0x14] sm:$0xf]
      %v315 = vld [vmem:[%s2 + $0x18] sm:$0xf]
      %v316 = vld [vmem:[%s2 + $0x1c] sm:$0xf]
      %v317 = vld [vmem:[%s2 + $0x20] sm:$0xf]
      %v318 = vld [vmem:[%s2 + $0x24] sm:$0xf]
      %v319 = vld [vmem:[%s2 + $0x28] sm:$0xf]
      %v320 = vld [vmem:[%s2 + $0x2c] sm:$0xf]
      %v321 = vld [vmem:[%s2 + $0x30] sm:$0xf]
      %v322 = vld [vmem:[%s2 + $0x34] sm:$0xf]
      %v323 = vld [vmem:[%s2 + $0x38] sm:$0xf]
      %v324 = vld [vmem:[%s2 + $0x3c] sm:$0xf]
      %v341 = vunpack.c.l.b16 %v309
      %v342 = vunpack.c.l.b16 %v310
      %v343 = vunpack.c.l.b16 %v311
      %v344 = vunpack.c.l.b16 %v312
      %v345 = vunpack.c.l.b16 %v313
      %v346 = vunpack.c.l.b16 %v314
      %v347 = vunpack.c.l.b16 %v315
      %v348 = vunpack.c.l.b16 %v316
      %v349 = vunpack.c.l.b16 %v317
      %v350 = vunpack.c.l.b16 %v318
      %v351 = vunpack.c.l.b16 %v319
      %v352 = vunpack.c.l.b16 %v320
      %v353 = vunpack.c.l.b16 %v321
      %v354 = vunpack.c.l.b16 %v322
      %v355 = vunpack.c.l.b16 %v323
      %v356 = vunpack.c.l.b16 %v324
      %v357 = vpack.c.b16 %v342, %v341
      %v358 = vpack.c.b16 %v344, %v343
      %v359 = vpack.c.b16 %v346, %v345
      %v360 = vpack.c.b16 %v348, %v347
      %v361 = vpack.c.b16 %v350, %v349
      %v362 = vpack.c.b16 %v352, %v351
      %v363 = vpack.c.b16 %v354, %v353
      %v364 = vpack.c.b16 %v356, %v355
      %373 = vmatprep.subr.bf16.mxu0 0
      %374 = vmatpush1.bf16.msra.mxu0 %v364
      %375 = vmatprep.subr.bf16.mxu0 0
      %376 = vmatpush1.bf16.msra.mxu0 %v363
      %377 = vmatprep.subr.bf16.mxu0 0
      %378 = vmatpush1.bf16.msra.mxu0 %v362
      %379 = vmatprep.subr.bf16.mxu0 0
      %380 = vmatpush1.bf16.msra.mxu0 %v361
      %381 = vmatprep.subr.bf16.mxu0 0
      %382 = vmatpush1.bf16.msra.mxu0 %v360
      %383 = vmatprep.subr.bf16.mxu0 0
      %384 = vmatpush1.bf16.msra.mxu0 %v359
      %385 = vmatprep.subr.bf16.mxu0 0
      %386 = vmatpush1.bf16.msra.mxu0 %v358
      %387 = vmatprep.subr.bf16.mxu0 0
      %388 = vmatpush1.bf16.msra.mxu0 %v357
      %389 = vmatprep.subr.bf16.mxu0 0
      %390 = vmatpush2.bf16.msra.mxu0 0
      %391 = vmatprep.subr.bf16.mxu0 0
      %392 = vmatpush2.bf16.msra.mxu0 0
      %393 = vmatprep.subr.bf16.mxu0 0
      %394 = vmatpush2.bf16.msra.mxu0 0
      %395 = vmatprep.subr.bf16.mxu0 0
      %396 = vmatpush2.bf16.msra.mxu0 0
      %397 = vmatprep.subr.bf16.mxu0 0
      %398 = vmatpush2.bf16.msra.mxu0 0
      %399 = vmatprep.subr.bf16.mxu0 0
      %400 = vmatpush2.bf16.msra.mxu0 0
      %401 = vmatprep.subr.bf16.mxu0 0
      %402 = vmatpush2.bf16.msra.mxu0 0
      %403 = vmatprep.subr.bf16.mxu0 0
      %404 = vmatpush2.bf16.msra.mxu0 0
      %405 = vmatprep.mubr.bf16.mxu0 0
      %406 = vmatmul.mubr.bf16.gmra.mxu0 %v301
      %v407 = vpop.f32.mrf.mxu0
      %v408 = vadd.f32 0.0, %v407
      %v409 = vpop.f32.mrf.mxu0
      %v410 = vpop.f32.mrf.mxu0
      %v411 = vadd.f32 0.0, %v410
      %v412 = vpop.f32.mrf.mxu0
      %413 = vmatprep.mubr.bf16.mxu0 0
      %414 = vmatmul.mubr.bf16.gmra.mxu0 %v302
      %v415 = vpop.f32.mrf.mxu0
      %v416 = vadd.f32 0.0, %v415
      %v417 = vpop.f32.mrf.mxu0
      %v418 = vpop.f32.mrf.mxu0
      %v419 = vadd.f32 0.0, %v418
      %v420 = vpop.f32.mrf.mxu0
      %421 = vmatprep.mubr.bf16.mxu0 0
      %422 = vmatmul.mubr.bf16.gmra.mxu0 %v303
      %v423 = vpop.f32.mrf.mxu0
      %v424 = vadd.f32 0.0, %v423
      %v425 = vpop.f32.mrf.mxu0
      %v426 = vpop.f32.mrf.mxu0
      %v427 = vadd.f32 0.0, %v426
      %v428 = vpop.f32.mrf.mxu0
      %429 = vmatprep.mubr.bf16.mxu0 0
      %430 = vmatmul.mubr.bf16.gmra.mxu0 %v304
      %v431 = vpop.f32.mrf.mxu0
      %v432 = vadd.f32 0.0, %v431
      %v433 = vpop.f32.mrf.mxu0
      %v434 = vpop.f32.mrf.mxu0
      %v435 = vadd.f32 0.0, %v434
      %v436 = vpop.f32.mrf.mxu0
      %437 = vmatprep.mubr.bf16.mxu0 0
      %438 = vmatmul.mubr.bf16.gmra.mxu0 %v305
      %v439 = vpop.f32.mrf.mxu0
      %v440 = vadd.f32 0.0, %v439
      %v441 = vpop.f32.mrf.mxu0
      %v442 = vpop.f32.mrf.mxu0
      %v443 = vadd.f32 0.0, %v442
      %v444 = vpop.f32.mrf.mxu0
      %445 = vmatprep.mubr.bf16.mxu0 0
      %446 = vmatmul.mubr.bf16.gmra.mxu0 %v306
      %v447 = vpop.f32.mrf.mxu0
      %v448 = vadd.f32 0.0, %v447
      %v449 = vpop.f32.mrf.mxu0
      %v450 = vpop.f32.mrf.mxu0
      %v451 = vadd.f32 0.0, %v450
      %v452 = vpop.f32.mrf.mxu0
      %453 = vmatprep.mubr.bf16.mxu0 0
      %454 = vmatmul.mubr.bf16.gmra.mxu0 %v307
      %v455 = vpop.f32.mrf.mxu0
      %v456 = vadd.f32 0.0, %v455
      %v457 = vpop.f32.mrf.mxu0
      %v458 = vpop.f32.mrf.mxu0
      %v459 = vadd.f32 0.0, %v458
      %v460 = vpop.f32.mrf.mxu0
      %461 = vmatprep.mubr.bf16.mxu0 0
      %462 = vmatmul.mubr.bf16.gmra.mxu0 %v308
      %v463 = vpop.f32.mrf.mxu0
      %v464 = vadd.f32 0.0, %v463
      %v465 = vpop.f32.mrf.mxu0
      %v466 = vpop.f32.mrf.mxu0
      %v467 = vadd.f32 0.0, %v466
      %v468 = vpop.f32.mrf.mxu0
      %469 = vdwg.mxu0
      %v470 = vld [vmem:[%s4] sm:$0xff]
      %v471 = vld [vmem:[%s4 + $0x8] sm:$0xff]
      %v472 = vld [vmem:[%s4 + $0x10] sm:$0xff]
      %v473 = vld [vmem:[%s4 + $0x18] sm:$0xff]
      %v474 = vld [vmem:[%s4 + $0x20] sm:$0xff]
      %v475 = vld [vmem:[%s4 + $0x28] sm:$0xff]
      %v476 = vld [vmem:[%s4 + $0x30] sm:$0xff]
      %v477 = vld [vmem:[%s4 + $0x38] sm:$0xff]
      %v478 = vld [vmem:[%s4 + $0x40] sm:$0xff]
      %v479 = vld [vmem:[%s4 + $0x48] sm:$0xff]
      %v480 = vld [vmem:[%s4 + $0x50] sm:$0xff]
      %v481 = vld [vmem:[%s4 + $0x58] sm:$0xff]
      %v482 = vld [vmem:[%s4 + $0x60] sm:$0xff]
      %v483 = vld [vmem:[%s4 + $0x68] sm:$0xff]
      %v484 = vld [vmem:[%s4 + $0x70] sm:$0xff]
      %v485 = vld [vmem:[%s4 + $0x78] sm:$0xff]
      %487 = vset.pattern.permute.xlu0 0
      %488 = vperm.xlu0 %487, %v470
      %v489 = vpop.permute.xlu0 %488
      %492 = vset.pattern.permute.xlu0 0
      %493 = vperm.xlu0 %492, %v471
      %v494 = vpop.permute.xlu0 %493
      %497 = vset.pattern.permute.xlu0 0
      %498 = vperm.xlu0 %497, %v472
      %v499 = vpop.permute.xlu0 %498
      %502 = vset.pattern.permute.xlu0 0
      %503 = vperm.xlu0 %502, %v473
      %v504 = vpop.permute.xlu0 %503
      %507 = vset.pattern.permute.xlu0 0
      %508 = vperm.xlu0 %507, %v474
      %v509 = vpop.permute.xlu0 %508
      %512 = vset.pattern.permute.xlu0 0
      %513 = vperm.xlu0 %512, %v475
      %v514 = vpop.permute.xlu0 %513
      %517 = vset.pattern.permute.xlu0 0
      %518 = vperm.xlu0 %517, %v476
      %v519 = vpop.permute.xlu0 %518
      %522 = vset.pattern.permute.xlu0 0
      %523 = vperm.xlu0 %522, %v477
      %v524 = vpop.permute.xlu0 %523
      %527 = vset.pattern.permute.xlu0 0
      %528 = vperm.xlu0 %527, %v478
      %v529 = vpop.permute.xlu0 %528
      %532 = vset.pattern.permute.xlu0 0
      %533 = vperm.xlu0 %532, %v479
      %v534 = vpop.permute.xlu0 %533
      %537 = vset.pattern.permute.xlu0 0
      %538 = vperm.xlu0 %537, %v480
      %v539 = vpop.permute.xlu0 %538
      %542 = vset.pattern.permute.xlu0 0
      %543 = vperm.xlu0 %542, %v481
      %v544 = vpop.permute.xlu0 %543
      %547 = vset.pattern.permute.xlu0 0
      %548 = vperm.xlu0 %547, %v482
      %v549 = vpop.permute.xlu0 %548
      %552 = vset.pattern.permute.xlu0 0
      %553 = vperm.xlu0 %552, %v483
      %v554 = vpop.permute.xlu0 %553
      %557 = vset.pattern.permute.xlu0 0
      %558 = vperm.xlu0 %557, %v484
      %v559 = vpop.permute.xlu0 %558
      %562 = vset.pattern.permute.xlu0 0
      %563 = vperm.xlu0 %562, %v485
      %v564 = vpop.permute.xlu0 %563
      %v566 = vmul.f32 %v408, %v489
      %v567 = vmul.f32 %v411, %v494
      %v568 = vmul.f32 %v416, %v499
      %v569 = vmul.f32 %v419, %v504
      %v570 = vmul.f32 %v424, %v509
      %v571 = vmul.f32 %v427, %v514
      %v572 = vmul.f32 %v432, %v519
      %v573 = vmul.f32 %v435, %v524
      %v574 = vmul.f32 %v440, %v529
      %v575 = vmul.f32 %v443, %v534
      %v576 = vmul.f32 %v448, %v539
      %v577 = vmul.f32 %v451, %v544
      %v578 = vmul.f32 %v456, %v549
      %v579 = vmul.f32 %v459, %v554
      %v580 = vmul.f32 %v464, %v559
      %v581 = vmul.f32 %v467, %v564
      %v582 = vld [vmem:[%s3] sm:$0x1]
      %v584 = vlaneseq
      %v585 = vshrl.u32 %v584, 7
      %v586 = vsub.s32 0, %v585
      %v587 = vrot.slane %v582, %v586
      %v589 = vadd.f32 %v566, %v587
      %v590 = vadd.f32 %v567, %v587
      %v591 = vadd.f32 %v568, %v587
      %v592 = vadd.f32 %v569, %v587
      %v593 = vadd.f32 %v570, %v587
      %v594 = vadd.f32 %v571, %v587
      %v595 = vadd.f32 %v572, %v587
      %v596 = vadd.f32 %v573, %v587
      %v597 = vadd.f32 %v574, %v587
      %v598 = vadd.f32 %v575, %v587
      %v599 = vadd.f32 %v576, %v587
      %v600 = vadd.f32 %v577, %v587
      %v601 = vadd.f32 %v578, %v587
      %v602 = vadd.f32 %v579, %v587
      %v603 = vadd.f32 %v580, %v587
      %v604 = vadd.f32 %v581, %v587
      %605 = vst [vmem:[#allocation6] sm:$0xff] %v589
      %606 = vst [vmem:[#allocation6 + $0x8] sm:$0xff] %v590
      %607 = vst [vmem:[#allocation6 + $0x10] sm:$0xff] %v591
      %608 = vst [vmem:[#allocation6 + $0x18] sm:$0xff] %v592
      %609 = vst [vmem:[#allocation6 + $0x20] sm:$0xff] %v593
      %610 = vst [vmem:[#allocation6 + $0x28] sm:$0xff] %v594
      %611 = vst [vmem:[#allocation6 + $0x30] sm:$0xff] %v595
      %612 = vst [vmem:[#allocation6 + $0x38] sm:$0xff] %v596
      %613 = vst [vmem:[#allocation6 + $0x40] sm:$0xff] %v597
      %614 = vst [vmem:[#allocation6 + $0x48] sm:$0xff] %v598
      %615 = vst [vmem:[#allocation6 + $0x50] sm:$0xff] %v599
      %616 = vst [vmem:[#allocation6 + $0x58] sm:$0xff] %v600
      %617 = vst [vmem:[#allocation6 + $0x60] sm:$0xff] %v601
      %618 = vst [vmem:[#allocation6 + $0x68] sm:$0xff] %v602
      %619 = vst [vmem:[#allocation6 + $0x70] sm:$0xff] %v603
      %620 = vst [vmem:[#allocation6 + $0x78] sm:$0xff] %v604
    $region33: #{tpu_custom_call.1} parent=1 // pred_fallthru
      _
    // Predicated region
    $region34: #{tpu_custom_call.1} parent=1 // pred_check
      _
    $region35: #{tpu_custom_call.1} parent=1 // pred_check_branch
      %622 = sbr.rel (0) target = $region37
    $region36: #{tpu_custom_call.1} parent=1 // pred_region
      %s624 = ssub.s32 2048, 2048
      %625 = vsyncadd [#allocation5], %s624
      %s626 = sshll.u32 [#allocation6], 4
      %s627 = int_to_ptr.vmem [resolvable:$true] %s626
      %632 = dma.vmem_to_hbm [thread:$0]  %s627, 2048, %s5, [#allocation5], 128, 128, 8
    $region37: #{tpu_custom_call.1} parent=1 // pred_fallthru
      _
    // Predicated region
    $region38: #{tpu_custom_call.1} parent=1 // pred_check
      _
    $region39: #{tpu_custom_call.1} parent=1 // pred_check_branch
      %634 = sbr.rel (0) target = $region41
    $region40: #{tpu_custom_call.1} parent=1 // pred_region
      %635 = dma.done [#allocation5], 2048
    $region41: #{tpu_custom_call.1} parent=1 // pred_fallthru
      _
    %636 = vsyncpa [#allocation4], 1
    %637 = vsyncpa [#allocation5], 1

</llo_original>
